<compile_context>
chip_gen: v7x
topology: tpu7x:2x2x1
jax: 0.10.0
libtpu: 0.0.40
codegen_flags: <defaults>
</compile_context>

<pallas_src>
import jax
import jax.numpy as jnp
from jax.experimental import pallas as pl
from jax.experimental.pallas import tpu as pltpu


def _pos_embed_kernel(pe_ref, out_ref):
    # Identity forward: out = positional_embedding (single full VMEM tile).
    out_ref[...] = pe_ref[...]


def position_embedding_forward(pos_embed: jax.Array) -> jax.Array:
    """Pallas equivalent of PositionEmbedding.forward() (identity on the parameter)."""
    return pl.pallas_call(
        _pos_embed_kernel,
        out_shape=jax.ShapeDtypeStruct(pos_embed.shape, pos_embed.dtype),
        # Gridless, full-array blocks resident in VMEM.
        in_specs=[pl.BlockSpec(memory_space=pltpu.MemorySpace.VMEM)],
        out_specs=pl.BlockSpec(memory_space=pltpu.MemorySpace.VMEM),
        # Output aliases the parameter buffer -> no second HBM allocation when
        # the caller donates the parameter; identical data either way.
        input_output_aliases={0: 0},
    )(pos_embed)


def init_position_embedding(key, embed_dim: int, spacial_dim: int) -> jax.Array:
    """Matches th.randn(embed_dim, spacial_dim**2 + 1) / embed_dim**0.5."""
    n_tok = spacial_dim ** 2 + 1
    return jax.random.normal(key, (embed_dim, n_tok), dtype=jnp.float32) / (embed_dim ** 0.5)


if __name__ == "__main__":
    embed_dim = 32
    spacial_dim = 4  # -> parameter shape (32, 17)

    key = jax.random.PRNGKey(0)
    pos_embed = init_position_embedding(key, embed_dim, spacial_dim)

    out = position_embedding_forward(pos_embed)
    out = jax.block_until_ready(out)

    # Sanity checks: forward() returns the parameter exactly.
    assert out.shape == (embed_dim, spacial_dim ** 2 + 1)
    assert out.dtype == jnp.float32
    assert bool(jnp.array_equal(out, pos_embed))

    print("KERNEL_OK")
</pallas_src>

<mosaic_0001>
module attributes {stable_mosaic.version = 11 : i64} {
  func.func @_pos_embed_kernel(%arg0: memref<32x17xf32, #tpu.memory_space<vmem>>, %arg1: memref<32x17xf32, #tpu.memory_space<vmem>>) attributes {dimension_semantics = [], scalar_prefetch = 0 : i64, scratch_operands = 0 : i64, tpu.core_type = #tpu.core_type<tc>} {
    %c0 = arith.constant 0 : index
    %c0_0 = arith.constant 0 : index
    %0 = vector.load %arg0[%c0, %c0_0] : memref<32x17xf32, #tpu.memory_space<vmem>>, vector<32x17xf32>
    %c0_1 = arith.constant 0 : index
    %c0_2 = arith.constant 0 : index
    %1 = vector.load %arg1[%c0_1, %c0_2] : memref<32x17xf32, #tpu.memory_space<vmem>>, vector<32x17xf32>
    tpu.vector_store %arg1[%c0_1, %c0_2], %0 {strides = array<i32>} : memref<32x17xf32, #tpu.memory_space<vmem>>, vector<32x17xf32>,
    return
  }
}

</mosaic_0001>

<llo_original>
// kernel: tpu_custom_call.1
$region0: #{tpu_custom_call.1}
  #allocation0 [shape = 'u32[]', space=smem, size = 0x4, offset = 0x4, fixed_abs, tag = 'smem constant byte address 0x4 - core index']
  #allocation1 [shape = 'u32[144,128]{1,0:T(1,128)}', space=vmem, size = 0x12000, scoped, tag = 'internal scratch']
  %s0 = inlined_call_operand.vmem [shape: f32[32,17], index: 0, kind: input, shape index: {}, may-alias: {0,1}]
  %s1 = inlined_call_operand.vmem [shape: f32[32,17], index: 1, kind: output, shape index: {}, may-alias: {0,1}]
  %s2 = sld [smem:[#allocation0]]
  $region14: #{tpu_custom_call.1} parent=0
    _
  %s4 = ssub.s32 1, %s2
  %s5 = scalar_select 0, %s4, %s2
  // Predicated region
  $region2: #{tpu_custom_call.1} parent=0 // pred_check
    _
  $region3: #{tpu_custom_call.1} parent=0 // pred_check_branch
    %7 = sbr.rel (0) target = $region5
  $region4: #{tpu_custom_call.1} parent=0 // pred_region
    _
  $region5: #{tpu_custom_call.1} parent=0 // pred_fallthru
    _
  %v8 = vld [vmem:[%s0] sm:$0xff]
  %v9 = vld [vmem:[%s0 + $0x8] sm:$0xff]
  %v10 = vld [vmem:[%s0 + $0x10] sm:$0xff]
  %v11 = vld [vmem:[%s0 + $0x18] sm:$0xff]
  %vm12 = vcmask 138240
  %13 = vst.msk [vmem:[%s1] sm:$0xff] %vm12, %v8
  %14 = vst.msk [vmem:[%s1 + $0x8] sm:$0xff] %vm12, %v9
  %15 = vst.msk [vmem:[%s1 + $0x10] sm:$0xff] %vm12, %v10
  %16 = vst.msk [vmem:[%s1 + $0x18] sm:$0xff] %vm12, %v11
  // Predicated region
  $region6: #{tpu_custom_call.1} parent=0 // pred_check
    _
  $region7: #{tpu_custom_call.1} parent=0 // pred_check_branch
    %18 = sbr.rel (0) target = $region9
  $region8: #{tpu_custom_call.1} parent=0 // pred_region
    _
  $region9: #{tpu_custom_call.1} parent=0 // pred_fallthru
    _
  // Predicated region
  $region10: #{tpu_custom_call.1} parent=0 // pred_check
    _
  $region11: #{tpu_custom_call.1} parent=0 // pred_check_branch
    %20 = sbr.rel (0) target = $region13
  $region12: #{tpu_custom_call.1} parent=0 // pred_region
    _
  $region13: #{tpu_custom_call.1} parent=0 // pred_fallthru
    _

</llo_original>
